<compile_context>
chip_gen: v7x
topology: tpu7x:2x2x1
jax: 0.10.0
libtpu: 0.0.40
codegen_flags: <defaults>
</compile_context>

<pallas_src>
import functools

import jax
import jax.numpy as jnp
from jax.experimental import pallas as pl
from jax.experimental.pallas import tpu as pltpu

_LANE = 128      # TPU lane width (last dim of every block)
_TR_MAX = 4096   # max sublane rows per block -> 2 MiB per f32 block
_NSPLIT = 2      # parallel partial-sum splits (v7x has 2 TensorCores/chip)

_reduction_modes = ['none', 'mean', 'sum']


# ---------------------------------------------------------------------------
# Helpers
# ---------------------------------------------------------------------------
def _round_up(x, m):
    return ((x + m - 1) // m) * m


def _pick_tr(rows):
    """Rows per block: multiple of 8, <= rows, <= _TR_MAX, >= rows/_NSPLIT."""
    return min(_TR_MAX, max(8, _round_up(-(-rows // _NSPLIT), 8)))


def _to_slab(x):
    """Flatten to a (rows, 128) slab. Zero-copy when x.size % 128 == 0 and
    rows >= 8 (the common case); otherwise a small zero-pad is added."""
    flat = x.reshape(-1)
    n = flat.shape[0]
    rows = max(_round_up(n, _LANE) // _LANE, 8)
    total = rows * _LANE
    if total != n:
        flat = jnp.pad(flat, (0, total - n))
    return flat.reshape(rows, _LANE), n


def _valid_mask(tr, bpc, n_valid):
    """Mask of globally-valid elements for the current (split, block) step."""
    blk = pl.program_id(0) * bpc + pl.program_id(1)
    base = blk * (tr * _LANE)
    row = jax.lax.broadcasted_iota(jnp.int32, (tr, _LANE), 0)
    lane = jax.lax.broadcasted_iota(jnp.int32, (tr, _LANE), 1)
    return (base + row * _LANE + lane) < n_valid


# ---------------------------------------------------------------------------
# Kernels
# ---------------------------------------------------------------------------
def _l1_none_kernel(p_ref, t_ref, o_ref):
    o_ref[...] = jnp.abs(p_ref[...] - t_ref[...])


def _l1_none_weighted_kernel(p_ref, t_ref, w_ref, o_ref):
    o_ref[...] = jnp.abs(p_ref[...] - t_ref[...]) * w_ref[...]


def _l1_sum_kernel(p_ref, t_ref, o_ref, *, tr, bpc, n_valid, need_mask):
    # Accumulate sum(|pred - target|) into a resident (8,128) f32 block
    # (one block per parallel split); only VPU adds per grid step.
    i = pl.program_id(1)

    @pl.when(i == 0)
    def _():
        o_ref[...] = jnp.zeros_like(o_ref)

    d = jnp.abs(p_ref[...].astype(jnp.float32) - t_ref[...].astype(jnp.float32))
    if need_mask:
        d = jnp.where(_valid_mask(tr, bpc, n_valid), d, 0.0)
    o_ref[...] += d.reshape(tr // 8, 8, _LANE).sum(axis=0)


def _l1_wsum_kernel(p_ref, t_ref, w_ref, ls_ref, ws_ref, *,
                    tr, bpc, n_valid, need_mask):
    # Accumulate sum(|pred - target| * w) and sum(w) per parallel split.
    i = pl.program_id(1)

    @pl.when(i == 0)
    def _():
        ls_ref[...] = jnp.zeros_like(ls_ref)
        ws_ref[...] = jnp.zeros_like(ws_ref)

    d = jnp.abs(p_ref[...].astype(jnp.float32) - t_ref[...].astype(jnp.float32))
    w = w_ref[...].astype(jnp.float32)
    if need_mask:
        m = _valid_mask(tr, bpc, n_valid)
        d = jnp.where(m, d, 0.0)
        w = jnp.where(m, w, 0.0)
    ls_ref[...] += (d * w).reshape(tr // 8, 8, _LANE).sum(axis=0)
    ws_ref[...] += w.reshape(tr // 8, 8, _LANE).sum(axis=0)


# ---------------------------------------------------------------------------
# pallas_call wrappers
# ---------------------------------------------------------------------------
def _l1_elementwise(p2d, t2d, w2d, n_valid):
    rows = p2d.shape[0]
    tr = _pick_tr(rows)
    grid = (pl.cdiv(rows, tr),)
    spec = pl.BlockSpec((tr, _LANE), lambda i: (i, 0))

    itemsize = p2d.dtype.itemsize
    blk_bytes = tr * _LANE * itemsize
    n_arrays = 3 if w2d is None else 4
    params = pltpu.CompilerParams(
        dimension_semantics=("parallel",),
        vmem_limit_bytes=int(n_arrays * 2 * blk_bytes + (4 << 20)))
    ce = pl.CostEstimate(flops=2 * n_valid, transcendentals=0,
                         bytes_accessed=n_arrays * n_valid * itemsize)

    if w2d is None:
        return pl.pallas_call(
            _l1_none_kernel,
            out_shape=jax.ShapeDtypeStruct(p2d.shape, p2d.dtype),
            grid=grid, in_specs=[spec, spec], out_specs=spec,
            compiler_params=params, cost_estimate=ce,
        )(p2d, t2d)
    return pl.pallas_call(
        _l1_none_weighted_kernel,
        out_shape=jax.ShapeDtypeStruct(p2d.shape, p2d.dtype),
        grid=grid, in_specs=[spec, spec, spec], out_specs=spec,
        compiler_params=params, cost_estimate=ce,
    )(p2d, t2d, w2d)


def _l1_reduce(p2d, t2d, w2d, n_valid):
    rows = p2d.shape[0]
    tr = _pick_tr(rows)
    nblocks = pl.cdiv(rows, tr)
    nsplit = min(_NSPLIT, nblocks)
    bpc = pl.cdiv(nblocks, nsplit)
    # Garbage can only appear via partial / overflow blocks; explicit zero
    # padding in _to_slab is harmless for sums.
    need_mask = (nsplit * bpc * tr != rows)

    def in_idx(c, i):
        return (jnp.minimum(c * bpc + i, nblocks - 1), 0)

    in_spec = pl.BlockSpec((tr, _LANE), in_idx)
    out_spec = pl.BlockSpec((8, _LANE), lambda c, i: (c, 0))
    out_sds = jax.ShapeDtypeStruct((nsplit * 8, _LANE), jnp.float32)

    itemsize = p2d.dtype.itemsize
    blk_bytes = tr * _LANE * itemsize
    n_in = 2 if w2d is None else 3
    params = pltpu.CompilerParams(
        dimension_semantics=("parallel", "arbitrary"),
        vmem_limit_bytes=int(n_in * 2 * blk_bytes + (4 << 20)))
    ce = pl.CostEstimate(flops=(3 if w2d is None else 6) * n_valid,
                         transcendentals=0,
                         bytes_accessed=n_in * n_valid * itemsize)

    if w2d is None:
        kernel = functools.partial(_l1_sum_kernel, tr=tr, bpc=bpc,
                                   n_valid=n_valid, need_mask=need_mask)
        out = pl.pallas_call(
            kernel, out_shape=out_sds, grid=(nsplit, bpc),
            in_specs=[in_spec, in_spec], out_specs=out_spec,
            compiler_params=params, cost_estimate=ce,
        )(p2d, t2d)
        return jnp.sum(out)

    kernel = functools.partial(_l1_wsum_kernel, tr=tr, bpc=bpc,
                               n_valid=n_valid, need_mask=need_mask)
    ls, ws = pl.pallas_call(
        kernel, out_shape=(out_sds, out_sds), grid=(nsplit, bpc),
        in_specs=[in_spec, in_spec, in_spec],
        out_specs=(out_spec, out_spec),
        compiler_params=params, cost_estimate=ce,
    )(p2d, t2d, w2d)
    return jnp.sum(ls), jnp.sum(ws)


# ---------------------------------------------------------------------------
# Pallas-backed l1_loss (mirrors basicsr's @weighted_loss l1_loss)
# ---------------------------------------------------------------------------
def l1_loss(pred, target, weight=None, reduction='mean'):
    if reduction not in _reduction_modes:
        raise ValueError(f'Unsupported reduction mode: {reduction}. '
                         f'Supported ones are: {_reduction_modes}')
    orig_shape = pred.shape
    n_elem = pred.size

    w_full = None
    if weight is not None:
        # basicsr: weight has the same ndim; channel dim is 1 or C.
        # TODO(synk): broadcast channel-singleton weights inside the kernel
        # (SMEM / index_map re-read) instead of materializing them in HBM.
        w_full = jnp.broadcast_to(weight, orig_shape)
        if w_full.dtype != pred.dtype:
            w_full = w_full.astype(pred.dtype)

    p2d, n = _to_slab(pred)
    t2d, _ = _to_slab(target)
    w2d = _to_slab(w_full)[0] if w_full is not None else None

    if reduction == 'none':
        out2d = _l1_elementwise(p2d, t2d, w2d, n)
        return out2d.reshape(-1)[:n].reshape(orig_shape)

    if weight is None:
        s = _l1_reduce(p2d, t2d, None, n)
        if reduction == 'sum':
            return s.astype(pred.dtype)
        return (s / jnp.float32(n_elem)).astype(pred.dtype)   # mean

    ls, ws = _l1_reduce(p2d, t2d, w2d, n)
    if reduction == 'sum':
        return ls.astype(pred.dtype)
    # 'mean' with weight: sum(loss * w) / denom, where denom == sum of the
    # broadcast weight (= weight.sum() if weight has C channels,
    # weight.sum() * C if the channel dim is 1) — basicsr weight_reduce_loss.
    return (ls / ws).astype(pred.dtype)


class L1Loss:
    """L1 (MAE) loss — Pallas TPU version of basicsr L1Loss."""

    def __init__(self, loss_weight=1.0, reduction='mean'):
        if reduction not in _reduction_modes:
            raise ValueError(f'Unsupported reduction mode: {reduction}. '
                             f'Supported ones are: {_reduction_modes}')
        self.loss_weight = loss_weight
        self.reduction = reduction

    def __call__(self, pred, target, weight=None, **kwargs):
        return self.loss_weight * l1_loss(pred, target, weight,
                                          reduction=self.reduction)


# ---------------------------------------------------------------------------
if __name__ == "__main__":
    key = jax.random.PRNGKey(0)
    k1, k2, k3, k4 = jax.random.split(key, 4)

    # NCHW, small shapes consistent with the module's forward contract.
    pred = jax.random.normal(k1, (2, 4, 16, 16), dtype=jnp.float32)
    target = jax.random.normal(k2, (2, 4, 16, 16), dtype=jnp.float32)
    weight = jax.random.uniform(k3, (2, 4, 16, 16), dtype=jnp.float32)
    weight_c1 = jax.random.uniform(k4, (2, 1, 16, 16), dtype=jnp.float32)

    checks = []

    # mean (default)
    checks.append((L1Loss(1.0, 'mean')(pred, target),
                   jnp.mean(jnp.abs(pred - target))))
    # sum
    checks.append((L1Loss(0.5, 'sum')(pred, target),
                   0.5 * jnp.sum(jnp.abs(pred - target))))
    # none
    checks.append((L1Loss(2.0, 'none')(pred, target),
                   2.0 * jnp.abs(pred - target)))
    # weighted mean, full-shape weight: sum(|d|*w) / sum(w)
    checks.append((L1Loss(1.0, 'mean')(pred, target, weight),
                   jnp.sum(jnp.abs(pred - target) * weight) / jnp.sum(weight)))
    # weighted mean, channel-singleton weight: denom = weight.sum() * C
    wb = jnp.broadcast_to(weight_c1, pred.shape)
    checks.append((L1Loss(1.0, 'mean')(pred, target, weight_c1),
                   jnp.sum(jnp.abs(pred - target) * wb)
                   / (jnp.sum(weight_c1) * pred.shape[1])))
    # weighted sum
    checks.append((L1Loss(1.0, 'sum')(pred, target, weight),
                   jnp.sum(jnp.abs(pred - target) * weight)))
    # weighted none
    checks.append((L1Loss(1.0, 'none')(pred, target, weight),
                   jnp.abs(pred - target) * weight))

    for got, ref in checks:
        got = jax.block_until_ready(got)
        assert jnp.allclose(got, ref, rtol=1e-5, atol=1e-5)

    print("KERNEL_OK")
</pallas_src>

<mosaic_0001>
module attributes {stable_mosaic.version = 11 : i64} {
  func.func @_l1_sum_kernel(%arg0: i32, %arg1: i32, %arg2: memref<8x128xf32, #tpu.memory_space<vmem>>, %arg3: memref<8x128xf32, #tpu.memory_space<vmem>>, %arg4: memref<8x128xf32, #tpu.memory_space<vmem>>) attributes {dimension_semantics = [#tpu.dimension_semantics<parallel>, #tpu.dimension_semantics<arbitrary>], iteration_bounds = array<i64: 2, 1>, scalar_prefetch = 0 : i64, scratch_operands = 0 : i64, tpu.core_type = #tpu.core_type<tc>, window_params = [{transform_indices = @transform_0, window_bounds = array<i64: 8, 128>}, {transform_indices = @transform_1, window_bounds = array<i64: 8, 128>}, {transform_indices = @transform_2, window_bounds = array<i64: 8, 128>}]} {
    %c0_i32 = arith.constant 0 : i32
    %0 = arith.cmpi eq, %arg1, %c0_i32 : i32
    %1 = arith.extui %0 : i1 to i32
    %c0_i32_0 = arith.constant 0 : i32
    %2 = arith.cmpi ne, %1, %c0_i32_0 : i32
    scf.if %2 {
      %cst_8 = arith.constant 0.000000e+00 : f32
      %12 = vector.broadcast %cst_8 : f32 to vector<8x128xf32>
      %c0_9 = arith.constant 0 : index
      %c0_10 = arith.constant 0 : index
      %13 = vector.load %arg4[%c0_9, %c0_10] : memref<8x128xf32, #tpu.memory_space<vmem>>, vector<8x128xf32>
      tpu.vector_store %arg4[%c0_9, %c0_10], %12 {strides = array<i32>} : memref<8x128xf32, #tpu.memory_space<vmem>>, vector<8x128xf32>,
    } else {
    }
    %c0 = arith.constant 0 : index
    %c0_1 = arith.constant 0 : index
    %3 = vector.load %arg2[%c0, %c0_1] : memref<8x128xf32, #tpu.memory_space<vmem>>, vector<8x128xf32>
    %c0_2 = arith.constant 0 : index
    %c0_3 = arith.constant 0 : index
    %4 = vector.load %arg3[%c0_2, %c0_3] : memref<8x128xf32, #tpu.memory_space<vmem>>, vector<8x128xf32>
    %5 = arith.subf %3, %4 : vector<8x128xf32>
    %6 = math.absf %5 : vector<8x128xf32>
    %c0_4 = arith.constant 0 : index
    %c0_5 = arith.constant 0 : index
    %7 = vector.load %arg4[%c0_4, %c0_5] : memref<8x128xf32, #tpu.memory_space<vmem>>, vector<8x128xf32>
    %8 = vector.shape_cast %6 : vector<8x128xf32> to vector<1x8x128xf32>
    %cst = arith.constant dense<0.000000e+00> : vector<8x128xf32>
    %9 = vector.multi_reduction <add>, %8, %cst [0] : vector<1x8x128xf32> to vector<8x128xf32>
    %10 = arith.addf %7, %9 : vector<8x128xf32>
    %c0_6 = arith.constant 0 : index
    %c0_7 = arith.constant 0 : index
    %11 = vector.load %arg4[%c0_6, %c0_7] : memref<8x128xf32, #tpu.memory_space<vmem>>, vector<8x128xf32>
    tpu.vector_store %arg4[%c0_6, %c0_7], %10 {strides = array<i32>} : memref<8x128xf32, #tpu.memory_space<vmem>>, vector<8x128xf32>,
    return
  }
  func.func @transform_0(%arg0: i32, %arg1: i32) -> (i32, i32) {
    %c1_i32 = arith.constant 1 : i32
    %0 = arith.muli %arg0, %c1_i32 : i32
    %1 = arith.addi %0, %arg1 : i32
    %c1_i32_0 = arith.constant 1 : i32
    %2 = arith.minsi %1, %c1_i32_0 : i32
    %c0_i32 = arith.constant 0 : i32
    %c0_i32_1 = arith.constant 0 : i32
    return %2, %c0_i32 : i32, i32
  }
  func.func @transform_1(%arg0: i32, %arg1: i32) -> (i32, i32) {
    %c1_i32 = arith.constant 1 : i32
    %0 = arith.muli %arg0, %c1_i32 : i32
    %1 = arith.addi %0, %arg1 : i32
    %c1_i32_0 = arith.constant 1 : i32
    %2 = arith.minsi %1, %c1_i32_0 : i32
    %c0_i32 = arith.constant 0 : i32
    %c0_i32_1 = arith.constant 0 : i32
    return %2, %c0_i32 : i32, i32
  }
  func.func @transform_2(%arg0: i32, %arg1: i32) -> (i32, i32) {
    %c0_i32 = arith.constant 0 : i32
    %c0_i32_0 = arith.constant 0 : i32
    return %arg0, %c0_i32 : i32, i32
  }
}

</mosaic_0001>

<llo_original>
// kernel: tpu_custom_call.1
$region0: #{tpu_custom_call.1}
  #allocation0 [shape = 'u32[]', space=smem, size = 0x4, offset = 0x4, fixed_abs, tag = 'smem constant byte address 0x4 - core index']
  #allocation1 [shape = 'u32[144,128]{1,0:T(1,128)}', space=vmem, size = 0x12000, scoped, tag = 'internal scratch']
  %s0 = inlined_call_operand.hbm [shape: f32[16,128], index: 0, kind: input, shape index: {}]
  %s1 = inlined_call_operand.hbm [shape: f32[16,128], index: 1, kind: input, shape index: {}]
  %s2 = inlined_call_operand.hbm [shape: f32[16,128], index: 2, kind: output, shape index: {}]
  %s3 = sld [smem:[#allocation0]]
  $region53: #{tpu_custom_call.1} parent=0
    _
  %s5 = ssub.s32 1, %s3
  %s6 = scalar_select 0, %s5, %s3
  $region1: #{tpu_custom_call.1} parent=0
    #allocation2 [shape = 'u8[8192]{0}', space=vmem, size = 0x2000, scoped, tag = 'input window, operand 0']
    #allocation3 [shape = 's32[2]{0}', space=sflag, size = 0x8, scoped, tag = 'scoped memory for tpu_custom_call.1']
    #allocation4 [shape = 's32[2]{0}', space=sflag, size = 0x8, scoped, tag = 'scoped memory for tpu_custom_call.1']
    #allocation5 [shape = 'u8[8192]{0}', space=vmem, size = 0x2000, scoped, tag = 'input window, operand 1']
    #allocation6 [shape = 's32[2]{0}', space=sflag, size = 0x8, scoped, tag = 'scoped memory for tpu_custom_call.1']
    #allocation7 [shape = 'u8[8192]{0}', space=vmem, size = 0x2000, scoped, tag = 'output window, operand 0']
    %7 = vsyncpa [#allocation3], 0
    %s8 = scalar_lea.sflag [#allocation3], 1
    %9 = vsyncpa %s8, 0
    %10 = vsyncpa [#allocation6], 0
    %s11 = scalar_lea.sflag [#allocation6], 1
    %12 = vsyncpa %s11, 0
    %13 = vsyncpa [#allocation4], 0
    %s14 = scalar_lea.sflag [#allocation4], 1
    %15 = vsyncpa %s14, 0
    loop: start=0, step=1, limit=4
    $region2: #{tpu_custom_call.1} parent=1 // loop_pre_header
      _
    $region3: #{tpu_custom_call.1} parent=1 // loop_header
      %s17 = sphi 0, %s21
      %p18 = scmp.ge.s32.totalorder %s17, 4
      %s24 = sphi 0, %s36
      %s25 = sphi 0, %s32
      %s26 = sphi 0, %s24
      %s27 = sphi 0, %s25
      %s28 = sphi 0, %s26
      %s29 = sphi 0, %s27
      %s45 = sphi 0, %s47
      %s48 = sphi 0, %s45
      %s49 = sphi 0, %s48
      %s65 = sphi 0, %s49
      %s77 = sphi 0, %s79
      %s80 = sphi 0, %s77
      %s81 = sphi 0, %s80
      %s97 = sphi 0, %s81
      %s103 = sphi 0, %s105
      %s106 = sphi 0, %s103
      %s107 = sphi 0, %s106
      %s123 = sphi 0, %s107
    $region4: #{tpu_custom_call.1} parent=1 // loop_header_branch
      %20 = sbr.rel (%p18) target = $region8
    $region5: #{tpu_custom_call.1} parent=1 // loop_body
      %s22 = ssub.s32 %s17, 1
      %s23 = ssub.s32 %s17, 2
      %s30 = sadd.s32 1, %s25
      %p31 = scmp.ge.s32.totalorder %s30, 1
      %s32 = scalar_select %p31, 0, %s30
      %s33 = sadd.s32 1, %s24
      %s34 = scalar_select %p31, %s33, %s24
      %p35 = scmp.ge.s32.totalorder %s34, 2
      %s36 = scalar_select %p35, 0, %s34
      %s37 = sadd.s32 %s24, %s25
      %p38 = scmp.lt.s32.totalorder %s37, 1
      %s39 = scalar_select %p38, %s37, 1
      %s40 = sadd.s32 %s36, %s32
      %p41 = scmp.lt.s32.totalorder %s40, 1
      %s42 = scalar_select %p41, %s40, 1
      %s43 = ssub.s32 %s39, %s42
      %p44 = scmp.eq.s32.totalorder %s43, 0
      %s46 = sadd.s32 %s45, 1
      %s47 = scalar_select %p44, %s45, %s46
      %p50 = pneg %p44
      %p51 = scmp.eq.s32.totalorder %s17, 1
      %p52 = por %p50, %p51
      %p53 = scmp.ne.s32.totalorder %s45, %s48
      %p54 = scmp.eq.s32.totalorder %s17, 0
      %p55 = por %p53, %p54
      %p56 = scmp.ne.s32.totalorder %s45, %s48
      %p57 = scmp.eq.s32.totalorder %s22, 1
      %p58 = por %p56, %p57
      %p59 = scmp.ne.s32.totalorder %s48, %s49
      %p60 = scmp.eq.s32.totalorder %s22, 0
      %p61 = por %p59, %p60
      %p62 = scmp.ne.s32.totalorder %s48, %s49
      %p63 = scmp.eq.s32.totalorder %s23, 1
      %p64 = por %p62, %p63
      %p66 = scmp.ne.s32.totalorder %s49, %s65
      %p67 = scmp.eq.s32.totalorder %s23, 0
      %p68 = por %p66, %p67
      %s69 = sadd.s32 %s24, %s25
      %p70 = scmp.lt.s32.totalorder %s69, 1
      %s71 = scalar_select %p70, %s69, 1
      %s72 = sadd.s32 %s36, %s32
      %p73 = scmp.lt.s32.totalorder %s72, 1
      %s74 = scalar_select %p73, %s72, 1
      %s75 = ssub.s32 %s71, %s74
      %p76 = scmp.eq.s32.totalorder %s75, 0
      %s78 = sadd.s32 %s77, 1
      %s79 = scalar_select %p76, %s77, %s78
      %p82 = pneg %p76
      %p83 = scmp.eq.s32.totalorder %s17, 1
      %p84 = por %p82, %p83
      %p85 = scmp.ne.s32.totalorder %s77, %s80
      %p86 = scmp.eq.s32.totalorder %s17, 0
      %p87 = por %p85, %p86
      %p88 = scmp.ne.s32.totalorder %s77, %s80
      %p89 = scmp.eq.s32.totalorder %s22, 1
      %p90 = por %p88, %p89
      %p91 = scmp.ne.s32.totalorder %s80, %s81
      %p92 = scmp.eq.s32.totalorder %s22, 0
      %p93 = por %p91, %p92
      %p94 = scmp.ne.s32.totalorder %s80, %s81
      %p95 = scmp.eq.s32.totalorder %s23, 1
      %p96 = por %p94, %p95
      %p98 = scmp.ne.s32.totalorder %s81, %s97
      %p99 = scmp.eq.s32.totalorder %s23, 0
      %p100 = por %p98, %p99
      %s101 = ssub.s32 %s24, %s36
      %p102 = scmp.eq.s32.totalorder %s101, 0
      %s104 = sadd.s32 %s103, 1
      %s105 = scalar_select %p102, %s103, %s104
      %p108 = pneg %p102
      %p109 = scmp.eq.s32.totalorder %s17, 1
      %p110 = por %p108, %p109
      %p111 = scmp.ne.s32.totalorder %s103, %s106
      %p112 = scmp.eq.s32.totalorder %s17, 0
      %p113 = por %p111, %p112
      %p114 = scmp.ne.s32.totalorder %s103, %s106
      %p115 = scmp.eq.s32.totalorder %s22, 1
      %p116 = por %p114, %p115
      %p117 = scmp.ne.s32.totalorder %s106, %s107
      %p118 = scmp.eq.s32.totalorder %s22, 0
      %p119 = por %p117, %p118
      %p120 = scmp.ne.s32.totalorder %s106, %s107
      %p121 = scmp.eq.s32.totalorder %s23, 1
      %p122 = por %p120, %p121
      %p124 = scmp.ne.s32.totalorder %s107, %s123
      %p125 = scmp.eq.s32.totalorder %s23, 0
      %p126 = por %p124, %p125
      %p127 = scmp.le.s32.totalorder 1, %s17
      %p128 = scmp.lt.s32.totalorder %s17, 3
      %p129 = pnand %p127, %p128
      %p130 = pneg %p129
      // Predicated region
      $region9: #{tpu_custom_call.1} parent=5 // pred_check
        _
      $region10: #{tpu_custom_call.1} parent=5 // pred_check_branch
        %132 = sbr.rel (%p129) target = $region12
      $region11: #{tpu_custom_call.1} parent=5 // pred_region
        %s133 = ssub.s32 %s17, 1
      $region12: #{tpu_custom_call.1} parent=5 // pred_fallthru
        _
      %p134 = scmp.lt.s32.totalorder %s17, 2
      // Predicated region
      $region13: #{tpu_custom_call.1} parent=5 // pred_check
        %p135 = pneg %p134
      $region14: #{tpu_custom_call.1} parent=5 // pred_check_branch
        %137 = sbr.rel (%p135) target = $region16
      $region15: #{tpu_custom_call.1} parent=5 // pred_region
        // Predicated region
        $region17: #{tpu_custom_call.1} parent=15 // pred_check
          %p138 = pneg %p55
        $region18: #{tpu_custom_call.1} parent=15 // pred_check_branch
          %140 = sbr.rel (%p138) target = $region20
        $region19: #{tpu_custom_call.1} parent=15 // pred_region
          %s141 = sand.u32 %s45, 1
          %s142 = scalar_lea.sflag [#allocation3], %s141
          %s143 = sand.u32 %s45, 1
          %s144 = smul.addr %s143, 8
          %s145 = scalar_lea.vmem [#allocation2], %s144
          %s146 = sadd.s32 %s24, %s25
          %p147 = scmp.lt.s32.totalorder %s146, 1
          %s148 = scalar_select %p147, %s146, 1
          %s150 = ssub.s32 128, 128
          %151 = vsyncadd %s142, %s150
          %s152 = smul.addr %s148, 128
          %s153 = scalar_lea.hbm %s0, %s152
          %s155 = sshll.u32 %s145, 4
          %s156 = int_to_ptr.vmem [resolvable:$true] %s155
          %158 = dma.hbm_to_vmem [thread:$0]  %s153, 128, %s156, %s142
        $region20: #{tpu_custom_call.1} parent=15 // pred_fallthru
          _
        // Predicated region
        $region21: #{tpu_custom_call.1} parent=15 // pred_check
          %p159 = pneg %p87
        $region22: #{tpu_custom_call.1} parent=15 // pred_check_branch
          %161 = sbr.rel (%p159) target = $region24
        $region23: #{tpu_custom_call.1} parent=15 // pred_region
          %s162 = sand.u32 %s77, 1
          %s163 = scalar_lea.sflag [#allocation6], %s162
          %s164 = sand.u32 %s77, 1
          %s165 = smul.addr %s164, 8
          %s166 = scalar_lea.vmem [#allocation5], %s165
          %s167 = sadd.s32 %s24, %s25
          %p168 = scmp.lt.s32.totalorder %s167, 1
          %s169 = scalar_select %p168, %s167, 1
          %s171 = ssub.s32 128, 128
          %172 = vsyncadd %s163, %s171
          %s173 = smul.addr %s169, 128
          %s174 = scalar_lea.hbm %s1, %s173
          %s176 = sshll.u32 %s166, 4
          %s177 = int_to_ptr.vmem [resolvable:$true] %s176
          %179 = dma.hbm_to_vmem [thread:$0]  %s174, 128, %s177, %s163
        $region24: #{tpu_custom_call.1} parent=15 // pred_fallthru
          _
      $region16: #{tpu_custom_call.1} parent=5 // pred_fallthru
        _
      %p180 = scmp.le.s32.totalorder 1, %s17
      %p181 = scmp.lt.s32.totalorder %s17, 3
      %p182 = pnand %p180, %p181
      %p183 = pneg %p182
      // Predicated region
      $region25: #{tpu_custom_call.1} parent=5 // pred_check
        _
      $region26: #{tpu_custom_call.1} parent=5 // pred_check_branch
        %185 = sbr.rel (%p182) target = $region28
      $region27: #{tpu_custom_call.1} parent=5 // pred_region
        %s186 = ssub.s32 %s17, 1
        %s187 = sand.u32 %s48, 1
        %s188 = scalar_lea.sflag [#allocation3], %s187
        %s189 = sand.u32 %s48, 1
        %s190 = smul.addr %s189, 8
        %s191 = scalar_lea.vmem [#allocation2], %s190
        // Predicated region
        $region29: #{tpu_custom_call.1} parent=27 // pred_check
          %p192 = pneg %p61
        $region30: #{tpu_custom_call.1} parent=27 // pred_check_branch
          %194 = sbr.rel (%p192) target = $region32
        $region31: #{tpu_custom_call.1} parent=27 // pred_region
          %195 = dma.done %s188, 128
        $region32: #{tpu_custom_call.1} parent=27 // pred_fallthru
          _
        %s196 = sand.u32 %s80, 1
        %s197 = scalar_lea.sflag [#allocation6], %s196
        %s198 = sand.u32 %s80, 1
        %s199 = smul.addr %s198, 8
        %s200 = scalar_lea.vmem [#allocation5], %s199
        // Predicated region
        $region33: #{tpu_custom_call.1} parent=27 // pred_check
          %p201 = pneg %p93
        $region34: #{tpu_custom_call.1} parent=27 // pred_check_branch
          %203 = sbr.rel (%p201) target = $region36
        $region35: #{tpu_custom_call.1} parent=27 // pred_region
          %204 = dma.done %s197, 128
        $region36: #{tpu_custom_call.1} parent=27 // pred_fallthru
          _
        %s205 = sand.u32 %s48, 1
        %s206 = scalar_lea.sflag [#allocation3], %s205
        %s207 = sand.u32 %s48, 1
        %s208 = smul.addr %s207, 8
        %s209 = scalar_lea.vmem [#allocation2], %s208
        %p210 = pneg %p61
        %p211 = pneg %p58
        %s212 = sand.u32 %s80, 1
        %s213 = scalar_lea.sflag [#allocation6], %s212
        %s214 = sand.u32 %s80, 1
        %s215 = smul.addr %s214, 8
        %s216 = scalar_lea.vmem [#allocation5], %s215
        %p217 = pneg %p93
        %p218 = pneg %p90
        %p219 = pneg %p119
        %p220 = pneg %p116
        %s221 = sand.u32 %s106, 1
        %s222 = scalar_lea.sflag [#allocation4], %s221
        %s223 = sand.u32 %s106, 1
        %s224 = smul.addr %s223, 8
        %s225 = scalar_lea.vmem [#allocation7], %s224
        %s226 = sadd.s32 %s26, %s27
        %p227 = scmp.lt.s32.totalorder %s226, 1
        %s228 = scalar_select %p227, %s226, 1
        %s229 = sadd.s32 %s26, %s27
        %p230 = scmp.lt.s32.totalorder %s229, 1
        %s231 = scalar_select %p230, %s229, 1
        %p232 = scmp.eq.s32.totalorder %s27, 0
        // Predicated region
        $region37: #{tpu_custom_call.1} parent=27 // pred_check
          %p233 = pneg %p232
        $region38: #{tpu_custom_call.1} parent=27 // pred_check_branch
          %235 = sbr.rel (%p233) target = $region40
        $region39: #{tpu_custom_call.1} parent=27 // pred_region
          %236 = vst [vmem:[%s225] sm:$0xff] 0.0
        $region40: #{tpu_custom_call.1} parent=27 // pred_fallthru
          _
        %v237 = vld [vmem:[%s191] sm:$0xff]
        %v238 = vld [vmem:[%s200] sm:$0xff]
        %v239 = vsub.f32 %v237, %v238
        %v240 = vand.u32 2147483647, %v239
        %v241 = vld [vmem:[%s225] sm:$0xff]
        %v242 = vadd.f32 %v240, 0.0
        %v243 = vadd.f32 %v241, %v242
        %244 = vst [vmem:[%s225] sm:$0xff] %v243
        %s245 = sand.u32 %s106, 1
        %s246 = scalar_lea.sflag [#allocation4], %s245
        %s247 = sand.u32 %s106, 1
        %s248 = smul.addr %s247, 8
        %s249 = scalar_lea.vmem [#allocation7], %s248
        // Predicated region
        $region41: #{tpu_custom_call.1} parent=27 // pred_check
          %p250 = pneg %p116
        $region42: #{tpu_custom_call.1} parent=27 // pred_check_branch
          %252 = sbr.rel (%p250) target = $region44
        $region43: #{tpu_custom_call.1} parent=27 // pred_region
          %s254 = ssub.s32 128, 128
          %255 = vsyncadd %s246, %s254
          %s256 = smul.addr %s26, 128
          %s257 = scalar_lea.hbm %s2, %s256
          %s259 = sshll.u32 %s249, 4
          %s260 = int_to_ptr.vmem [resolvable:$true] %s259
          %262 = dma.vmem_to_hbm [thread:$0]  %s260, 128, %s257, %s246
        $region44: #{tpu_custom_call.1} parent=27 // pred_fallthru
          _
      $region28: #{tpu_custom_call.1} parent=5 // pred_fallthru
        _
      %p263 = scmp.le.s32.totalorder 2, %s17
      // Predicated region
      $region45: #{tpu_custom_call.1} parent=5 // pred_check
        %p264 = pneg %p263
      $region46: #{tpu_custom_call.1} parent=5 // pred_check_branch
        %266 = sbr.rel (%p264) target = $region48
      $region47: #{tpu_custom_call.1} parent=5 // pred_region
        %s267 = ssub.s32 %s17, 2
        // Predicated region
        $region49: #{tpu_custom_call.1} parent=47 // pred_check
          %p268 = pneg %p122
        $region50: #{tpu_custom_call.1} parent=47 // pred_check_branch
          %270 = sbr.rel (%p268) target = $region52
        $region51: #{tpu_custom_call.1} parent=47 // pred_region
          %s271 = sand.u32 %s107, 1
          %s272 = scalar_lea.sflag [#allocation4], %s271
          %s273 = sand.u32 %s107, 1
          %s274 = smul.addr %s273, 8
          %s275 = scalar_lea.vmem [#allocation7], %s274
          %276 = dma.done %s272, 128
        $region52: #{tpu_custom_call.1} parent=47 // pred_fallthru
          _
      $region48: #{tpu_custom_call.1} parent=5 // pred_fallthru
        _
    $region6: #{tpu_custom_call.1} parent=1 // loop_footer
      %s21 = sadd.s32 1, %s17
    $region7: #{tpu_custom_call.1} parent=1 // loop_footer_branch
      %16 = sbr.rel target = $region3
    $region8: #{tpu_custom_call.1} parent=1 // loop_exit
      _
    %277 = vsyncpa [#allocation3], 1
    %s278 = scalar_lea.sflag [#allocation3], 1
    %279 = vsyncpa %s278, 1
    %280 = vsyncpa [#allocation6], 1
    %s281 = scalar_lea.sflag [#allocation6], 1
    %282 = vsyncpa %s281, 1
    %283 = vsyncpa [#allocation4], 1
    %s284 = scalar_lea.sflag [#allocation4], 1
    %285 = vsyncpa %s284, 1

</llo_original>
